<compile_context>
chip_gen: v6e
topology: v6e:2x2x1
jax: 0.10.0
libtpu: 0.0.40
codegen_flags: <defaults>
</compile_context>

<pallas_src>
import functools

import jax
import jax.numpy as jnp
from jax.experimental import pallas as pl
from jax.experimental.pallas import tpu as pltpu


def _conv3x3_kernel(w_ref, x_ref, o_ref, slab_ref, *, cin, h, w, cpad):
    """3x3 same-padding conv over the whole (batch-folded) input.

    w_ref:    (cout, 9*cpad + 8) f32  packed weights; columns cpad*t .. cpad*t+cin-1
              hold tap t (t = kh*3 + kw), column 9*cpad holds the bias, rest 0.
    x_ref:    (cin, N*H*W)       f32  spatial+batch flattened onto lanes.
    o_ref:    (cout, N*H*W)
    slab_ref: (9*cpad + 8, N*H*W) f32 VMEM scratch holding the stacked taps.
    """
    total = x_ref.shape[1]
    x = x_ref[...]                                        # (cin, total)

    # Per-lane spatial coordinates within each image (masks are (1, total) and
    # broadcast in the jnp.where below).
    pos = jax.lax.broadcasted_iota(jnp.int32, (1, total), 1)
    if (w & (w - 1)) == 0 and (h & (h - 1)) == 0:
        col = pos & (w - 1)
        row = (pos >> (w.bit_length() - 1)) & (h - 1)
    else:
        img = pos % (h * w)
        row = img // w
        col = img % w
    ok_top = row >= 1          # tap dh == -1 valid
    ok_bot = row <= h - 2      # tap dh == +1 valid
    ok_lft = col >= 1          # tap dw == -1 valid
    ok_rgt = col <= w - 2      # tap dw == +1 valid

    # Zero the slab (covers the sublane padding rows that meet zero weight
    # columns -- avoids garbage*0 = NaN), then set the constant ones row that
    # carries the bias through the matmul.
    slab_ref[...] = jnp.zeros_like(slab_ref)
    slab_ref[pl.ds(9 * cpad, 1), :] = jnp.ones((1, total), jnp.float32)

    t = 0
    for dh in (-1, 0, 1):
        for dw in (-1, 0, 1):
            d = dh * w + dw                               # flat-index offset
            # shifted[p] = x[p + d]; every position where the lane roll wraps
            # across an image/batch boundary is zeroed by the masks below.
            tap = x if d == 0 else pltpu.roll(x, shift=(-d) % total, axis=1)
            mask = None
            if dh == -1:
                mask = ok_top
            elif dh == 1:
                mask = ok_bot
            if dw == -1:
                mask = ok_lft if mask is None else jnp.logical_and(mask, ok_lft)
            elif dw == 1:
                mask = ok_rgt if mask is None else jnp.logical_and(mask, ok_rgt)
            if mask is not None:
                tap = jnp.where(mask, tap, 0.0)
            slab_ref[pl.ds(cpad * t, cin), :] = tap       # 8-sublane-aligned block
            t += 1

    # Single MXU matmul: (cout, 9*cpad+8) @ (9*cpad+8, total) -> (cout, total).
    # Input-channel AND tap accumulation happen inside the MXU in f32; bias is
    # folded in via the ones row.
    o_ref[...] = jnp.dot(w_ref[...], slab_ref[...],
                         preferred_element_type=jnp.float32).astype(o_ref.dtype)


def conv2d_3x3_pallas(x, weight, bias):
    """x: (N, Cin, H, W) f32; weight: (Cout, Cin, 3, 3); bias: (Cout,)."""
    n, cin, h, w = x.shape
    cout = weight.shape[0]
    total = n * h * w
    cpad = ((cin + 7) // 8) * 8          # sublane-aligned stride per tap block
    kdim = 9 * cpad + 8                  # 9 tap blocks + 1 bias/ones block

    # Layout plumbing only: fold the batch onto the lane axis and pack the
    # weights (tap-major, zero-padded to 8 sublanes per tap) + bias into one
    # 2-D tile that matches the stacked tap slab.
    x_flat = jnp.transpose(x, (1, 0, 2, 3)).reshape(cin, total).astype(jnp.float32)
    w_taps = jnp.transpose(weight.astype(jnp.float32), (2, 3, 0, 1)).reshape(9, cout, cin)
    blocks = [jnp.pad(w_taps[t], ((0, 0), (0, cpad - cin))) for t in range(9)]
    blocks.append(jnp.pad(bias.astype(jnp.float32).reshape(cout, 1), ((0, 0), (0, 7))))
    w_pack = jnp.concatenate(blocks, axis=1)              # (cout, kdim)

    kernel = functools.partial(_conv3x3_kernel, cin=cin, h=h, w=w, cpad=cpad)

    out_flat = pl.pallas_call(
        kernel,
        out_shape=jax.ShapeDtypeStruct((cout, total), x.dtype),
        in_specs=[
            pl.BlockSpec(memory_space=pltpu.MemorySpace.VMEM),   # packed weights+bias
            pl.BlockSpec(memory_space=pltpu.MemorySpace.VMEM),   # folded input
        ],
        out_specs=pl.BlockSpec(memory_space=pltpu.MemorySpace.VMEM),
        scratch_shapes=[pltpu.VMEM((kdim, total), jnp.float32)],
        cost_estimate=pl.CostEstimate(
            flops=2 * cout * 9 * cin * total,
            transcendentals=0,
            bytes_accessed=4 * (x_flat.size + cout * total + w_pack.size)),
    )(w_pack, x_flat)

    return jnp.transpose(out_flat.reshape(cout, n, h, w), (1, 0, 2, 3))


def _conv_ref(x, weight, bias):
    out = jax.lax.conv_general_dilated(
        x, weight, window_strides=(1, 1), padding=((1, 1), (1, 1)),
        dimension_numbers=("NCHW", "OIHW", "NCHW"),
        precision=jax.lax.Precision.HIGHEST)
    return out + bias[None, :, None, None]


if __name__ == "__main__":
    # Small shapes consistent with the module: N=2, Cin=Cout=3, H=W=16.
    key = jax.random.PRNGKey(0)
    kx, kw, kb = jax.random.split(key, 3)

    N, CIN, COUT, H, W = 2, 3, 3, 16, 16
    x = jax.random.normal(kx, (N, CIN, H, W), dtype=jnp.float32)

    # Deterministic parameter init (PyTorch-style uniform(-1/sqrt(fan_in), ..)).
    fan_in = CIN * 3 * 3
    bound = 1.0 / (fan_in ** 0.5)
    weight = jax.random.uniform(kw, (COUT, CIN, 3, 3), jnp.float32,
                                minval=-bound, maxval=bound)
    bias = jax.random.uniform(kb, (COUT,), jnp.float32,
                              minval=-bound, maxval=bound)

    out = conv2d_3x3_pallas(x, weight, bias)
    out = jax.block_until_ready(out)

    # Correctness check against XLA's conv (same semantics as torch Conv2d).
    ref = _conv_ref(x, weight, bias)
    assert out.shape == (N, COUT, H, W)
    assert jnp.allclose(out, ref, atol=1e-4, rtol=1e-4), (
        float(jnp.max(jnp.abs(out - ref))))

    # Explicit cross-image-wrap check for the batch-folded lane layout: scale
    # image 0 by 1e3 so any leakage across the folded image boundary into
    # image 1 would blow the tolerance.
    x2 = x.at[0].mul(1e3)
    out2 = jax.block_until_ready(conv2d_3x3_pallas(x2, weight, bias))
    ref2 = _conv_ref(x2, weight, bias)
    assert jnp.allclose(out2, ref2, atol=1e-2, rtol=1e-4), (
        float(jnp.max(jnp.abs(out2 - ref2))))

    print("KERNEL_OK")
</pallas_src>

<mosaic_0001>
module attributes {stable_mosaic.version = 11 : i64} {
  func.func @_conv3x3_kernel(%arg0: memref<3x80xf32, #tpu.memory_space<vmem>>, %arg1: memref<3x512xf32, #tpu.memory_space<vmem>>, %arg2: memref<3x512xf32, #tpu.memory_space<vmem>>, %arg3: memref<80x512xf32, #tpu.memory_space<vmem>>) attributes {dimension_semantics = [], scalar_prefetch = 0 : i64, scratch_operands = 1 : i64, tpu.core_type = #tpu.core_type<tc>} {
    %c0 = arith.constant 0 : index
    %c0_0 = arith.constant 0 : index
    %0 = vector.load %arg1[%c0, %c0_0] : memref<3x512xf32, #tpu.memory_space<vmem>>, vector<3x512xf32>
    %1 = tpu.iota {dimensions = array<i32: 1>} : vector<1x512xi32>
    %c15_i32 = arith.constant 15 : i32
    %2 = vector.broadcast %c15_i32 : i32 to vector<1x512xi32>
    %3 = arith.andi %1, %2 : vector<1x512xi32>
    %c4_i32 = arith.constant 4 : i32
    %4 = vector.broadcast %c4_i32 : i32 to vector<1x512xi32>
    %5 = arith.shrsi %1, %4 : vector<1x512xi32>
    %c15_i32_1 = arith.constant 15 : i32
    %6 = vector.broadcast %c15_i32_1 : i32 to vector<1x512xi32>
    %7 = arith.andi %5, %6 : vector<1x512xi32>
    %c1_i32 = arith.constant 1 : i32
    %8 = vector.broadcast %c1_i32 : i32 to vector<1x512xi32>
    %9 = arith.cmpi sge, %7, %8 : vector<1x512xi32>
    %c14_i32 = arith.constant 14 : i32
    %10 = vector.broadcast %c14_i32 : i32 to vector<1x512xi32>
    %11 = arith.cmpi sle, %7, %10 : vector<1x512xi32>
    %c1_i32_2 = arith.constant 1 : i32
    %12 = vector.broadcast %c1_i32_2 : i32 to vector<1x512xi32>
    %13 = arith.cmpi sge, %3, %12 : vector<1x512xi32>
    %c14_i32_3 = arith.constant 14 : i32
    %14 = vector.broadcast %c14_i32_3 : i32 to vector<1x512xi32>
    %15 = arith.cmpi sle, %3, %14 : vector<1x512xi32>
    %cst = arith.constant 0.000000e+00 : f32
    %16 = vector.broadcast %cst : f32 to vector<80x512xf32>
    %c0_4 = arith.constant 0 : index
    %c0_5 = arith.constant 0 : index
    %17 = vector.load %arg3[%c0_4, %c0_5] : memref<80x512xf32, #tpu.memory_space<vmem>>, vector<80x512xf32>
    tpu.vector_store %arg3[%c0_4, %c0_5], %16 {strides = array<i32>} : memref<80x512xf32, #tpu.memory_space<vmem>>, vector<80x512xf32>,
    %cst_6 = arith.constant 1.000000e+00 : f32
    %18 = vector.broadcast %cst_6 : f32 to vector<1x512xf32>
    %c72 = arith.constant 72 : index
    %c0_7 = arith.constant 0 : index
    %19 = vector.load %arg3[%c72, %c0_7] : memref<80x512xf32, #tpu.memory_space<vmem>>, vector<1x512xf32>
    tpu.vector_store %arg3[%c72, %c0_7], %18 {strides = array<i32>} : memref<80x512xf32, #tpu.memory_space<vmem>>, vector<1x512xf32>,
    %c17_i32 = arith.constant 17 : i32
    %20 = tpu.dynamic_rotate %0 by %c17_i32 dim 1 : vector<3x512xf32>, i32 -> vector<3x512xf32>
    %21 = arith.andi %9, %13 : vector<1x512xi1>
    %cst_8 = arith.constant 0.000000e+00 : f32
    %22 = vector.shape_cast %21 : vector<1x512xi1> to vector<1x512xi1>
    %23 = vector.broadcast %22 : vector<1x512xi1> to vector<3x512xi1>
    %24 = vector.broadcast %cst_8 : f32 to vector<3x512xf32>
    %25 = arith.select %23, %20, %24 : vector<3x512xi1>, vector<3x512xf32>
    %c0_9 = arith.constant 0 : index
    %c0_10 = arith.constant 0 : index
    %26 = vector.load %arg3[%c0_9, %c0_10] : memref<80x512xf32, #tpu.memory_space<vmem>>, vector<3x512xf32>
    tpu.vector_store %arg3[%c0_9, %c0_10], %25 {strides = array<i32>} : memref<80x512xf32, #tpu.memory_space<vmem>>, vector<3x512xf32>,
    %c16_i32 = arith.constant 16 : i32
    %27 = tpu.dynamic_rotate %0 by %c16_i32 dim 1 : vector<3x512xf32>, i32 -> vector<3x512xf32>
    %cst_11 = arith.constant 0.000000e+00 : f32
    %28 = vector.shape_cast %9 : vector<1x512xi1> to vector<1x512xi1>
    %29 = vector.broadcast %28 : vector<1x512xi1> to vector<3x512xi1>
    %30 = vector.broadcast %cst_11 : f32 to vector<3x512xf32>
    %31 = arith.select %29, %27, %30 : vector<3x512xi1>, vector<3x512xf32>
    %c8 = arith.constant 8 : index
    %c0_12 = arith.constant 0 : index
    %32 = vector.load %arg3[%c8, %c0_12] : memref<80x512xf32, #tpu.memory_space<vmem>>, vector<3x512xf32>
    tpu.vector_store %arg3[%c8, %c0_12], %31 {strides = array<i32>} : memref<80x512xf32, #tpu.memory_space<vmem>>, vector<3x512xf32>,
    %c15_i32_13 = arith.constant 15 : i32
    %33 = tpu.dynamic_rotate %0 by %c15_i32_13 dim 1 : vector<3x512xf32>, i32 -> vector<3x512xf32>
    %34 = arith.andi %9, %15 : vector<1x512xi1>
    %cst_14 = arith.constant 0.000000e+00 : f32
    %35 = vector.shape_cast %34 : vector<1x512xi1> to vector<1x512xi1>
    %36 = vector.broadcast %35 : vector<1x512xi1> to vector<3x512xi1>
    %37 = vector.broadcast %cst_14 : f32 to vector<3x512xf32>
    %38 = arith.select %36, %33, %37 : vector<3x512xi1>, vector<3x512xf32>
    %c16 = arith.constant 16 : index
    %c0_15 = arith.constant 0 : index
    %39 = vector.load %arg3[%c16, %c0_15] : memref<80x512xf32, #tpu.memory_space<vmem>>, vector<3x512xf32>
    tpu.vector_store %arg3[%c16, %c0_15], %38 {strides = array<i32>} : memref<80x512xf32, #tpu.memory_space<vmem>>, vector<3x512xf32>,
    %c1_i32_16 = arith.constant 1 : i32
    %40 = tpu.dynamic_rotate %0 by %c1_i32_16 dim 1 : vector<3x512xf32>, i32 -> vector<3x512xf32>
    %cst_17 = arith.constant 0.000000e+00 : f32
    %41 = vector.shape_cast %13 : vector<1x512xi1> to vector<1x512xi1>
    %42 = vector.broadcast %41 : vector<1x512xi1> to vector<3x512xi1>
    %43 = vector.broadcast %cst_17 : f32 to vector<3x512xf32>
    %44 = arith.select %42, %40, %43 : vector<3x512xi1>, vector<3x512xf32>
    %c24 = arith.constant 24 : index
    %c0_18 = arith.constant 0 : index
    %45 = vector.load %arg3[%c24, %c0_18] : memref<80x512xf32, #tpu.memory_space<vmem>>, vector<3x512xf32>
    tpu.vector_store %arg3[%c24, %c0_18], %44 {strides = array<i32>} : memref<80x512xf32, #tpu.memory_space<vmem>>, vector<3x512xf32>,
    %c32 = arith.constant 32 : index
    %c0_19 = arith.constant 0 : index
    %46 = vector.load %arg3[%c32, %c0_19] : memref<80x512xf32, #tpu.memory_space<vmem>>, vector<3x512xf32>
    tpu.vector_store %arg3[%c32, %c0_19], %0 {strides = array<i32>} : memref<80x512xf32, #tpu.memory_space<vmem>>, vector<3x512xf32>,
    %c511_i32 = arith.constant 511 : i32
    %47 = tpu.dynamic_rotate %0 by %c511_i32 dim 1 : vector<3x512xf32>, i32 -> vector<3x512xf32>
    %cst_20 = arith.constant 0.000000e+00 : f32
    %48 = vector.shape_cast %15 : vector<1x512xi1> to vector<1x512xi1>
    %49 = vector.broadcast %48 : vector<1x512xi1> to vector<3x512xi1>
    %50 = vector.broadcast %cst_20 : f32 to vector<3x512xf32>
    %51 = arith.select %49, %47, %50 : vector<3x512xi1>, vector<3x512xf32>
    %c40 = arith.constant 40 : index
    %c0_21 = arith.constant 0 : index
    %52 = vector.load %arg3[%c40, %c0_21] : memref<80x512xf32, #tpu.memory_space<vmem>>, vector<3x512xf32>
    tpu.vector_store %arg3[%c40, %c0_21], %51 {strides = array<i32>} : memref<80x512xf32, #tpu.memory_space<vmem>>, vector<3x512xf32>,
    %c497_i32 = arith.constant 497 : i32
    %53 = tpu.dynamic_rotate %0 by %c497_i32 dim 1 : vector<3x512xf32>, i32 -> vector<3x512xf32>
    %54 = arith.andi %11, %13 : vector<1x512xi1>
    %cst_22 = arith.constant 0.000000e+00 : f32
    %55 = vector.shape_cast %54 : vector<1x512xi1> to vector<1x512xi1>
    %56 = vector.broadcast %55 : vector<1x512xi1> to vector<3x512xi1>
    %57 = vector.broadcast %cst_22 : f32 to vector<3x512xf32>
    %58 = arith.select %56, %53, %57 : vector<3x512xi1>, vector<3x512xf32>
    %c48 = arith.constant 48 : index
    %c0_23 = arith.constant 0 : index
    %59 = vector.load %arg3[%c48, %c0_23] : memref<80x512xf32, #tpu.memory_space<vmem>>, vector<3x512xf32>
    tpu.vector_store %arg3[%c48, %c0_23], %58 {strides = array<i32>} : memref<80x512xf32, #tpu.memory_space<vmem>>, vector<3x512xf32>,
    %c496_i32 = arith.constant 496 : i32
    %60 = tpu.dynamic_rotate %0 by %c496_i32 dim 1 : vector<3x512xf32>, i32 -> vector<3x512xf32>
    %cst_24 = arith.constant 0.000000e+00 : f32
    %61 = vector.shape_cast %11 : vector<1x512xi1> to vector<1x512xi1>
    %62 = vector.broadcast %61 : vector<1x512xi1> to vector<3x512xi1>
    %63 = vector.broadcast %cst_24 : f32 to vector<3x512xf32>
    %64 = arith.select %62, %60, %63 : vector<3x512xi1>, vector<3x512xf32>
    %c56 = arith.constant 56 : index
    %c0_25 = arith.constant 0 : index
    %65 = vector.load %arg3[%c56, %c0_25] : memref<80x512xf32, #tpu.memory_space<vmem>>, vector<3x512xf32>
    tpu.vector_store %arg3[%c56, %c0_25], %64 {strides = array<i32>} : memref<80x512xf32, #tpu.memory_space<vmem>>, vector<3x512xf32>,
    %c495_i32 = arith.constant 495 : i32
    %66 = tpu.dynamic_rotate %0 by %c495_i32 dim 1 : vector<3x512xf32>, i32 -> vector<3x512xf32>
    %67 = arith.andi %11, %15 : vector<1x512xi1>
    %cst_26 = arith.constant 0.000000e+00 : f32
    %68 = vector.shape_cast %67 : vector<1x512xi1> to vector<1x512xi1>
    %69 = vector.broadcast %68 : vector<1x512xi1> to vector<3x512xi1>
    %70 = vector.broadcast %cst_26 : f32 to vector<3x512xf32>
    %71 = arith.select %69, %66, %70 : vector<3x512xi1>, vector<3x512xf32>
    %c64 = arith.constant 64 : index
    %c0_27 = arith.constant 0 : index
    %72 = vector.load %arg3[%c64, %c0_27] : memref<80x512xf32, #tpu.memory_space<vmem>>, vector<3x512xf32>
    tpu.vector_store %arg3[%c64, %c0_27], %71 {strides = array<i32>} : memref<80x512xf32, #tpu.memory_space<vmem>>, vector<3x512xf32>,
    %c0_28 = arith.constant 0 : index
    %c0_29 = arith.constant 0 : index
    %73 = vector.load %arg0[%c0_28, %c0_29] : memref<3x80xf32, #tpu.memory_space<vmem>>, vector<3x80xf32>
    %c0_30 = arith.constant 0 : index
    %c0_31 = arith.constant 0 : index
    %74 = vector.load %arg3[%c0_30, %c0_31] : memref<80x512xf32, #tpu.memory_space<vmem>>, vector<80x512xf32>
    %cst_32 = arith.constant dense<0.000000e+00> : vector<3x512xf32>
    %75 = tpu.matmul %73, %74, %cst_32 {dimension_numbers = #tpu.dot_dimension_numbers<[1], [0], [0], [1], [0, 0, 1, 1], [], []>} : vector<3x80xf32>, vector<80x512xf32>, vector<3x512xf32> -> vector<3x512xf32>
    %c0_33 = arith.constant 0 : index
    %c0_34 = arith.constant 0 : index
    %76 = vector.load %arg2[%c0_33, %c0_34] : memref<3x512xf32, #tpu.memory_space<vmem>>, vector<3x512xf32>
    tpu.vector_store %arg2[%c0_33, %c0_34], %75 {strides = array<i32>} : memref<3x512xf32, #tpu.memory_space<vmem>>, vector<3x512xf32>,
    return
  }
}

</mosaic_0001>

<llo_original>
// kernel: tpu_custom_call.1
$region0: #{tpu_custom_call.1}
  #allocation0 [shape = 'u32[]', space=smem, size = 0x4, offset = 0x4, fixed_abs, tag = 'smem constant byte address 0x4 - core index']
  #allocation1 [shape = 'u32[144,128]{1,0:T(1,128)}', space=vmem, size = 0x12000, scoped, tag = 'internal scratch']
  #allocation2 [shape = 'f32[80,512]{1,0:T(8,128)}', space=vmem, size = 0x28000, scoped, tag = 'scratch operand']
  %s0 = inlined_call_operand.hbm [shape: f32[3,80], index: 0, kind: input, shape index: {}]
  %s1 = inlined_call_operand.hbm [shape: f32[3,512], index: 1, kind: input, shape index: {}]
  %s2 = inlined_call_operand.hbm [shape: f32[3,512], index: 2, kind: output, shape index: {}]
  %s3 = sld [smem:[#allocation0]]
  $region26: #{tpu_custom_call.1} parent=0
    _
  %s5 = ssub.s32 1, %s3
  %s6 = scalar_select 0, %s5, %s3
  $region1: #{tpu_custom_call.1} parent=0
    #allocation3 [shape = 'u8[2048]{0}', space=vmem, size = 0x800, scoped, tag = 'input window, operand 0, single buffered']
    #allocation4 [shape = 's32[1]{0}', space=sflag, size = 0x4, scoped, tag = 'scoped memory for tpu_custom_call.1']
    #allocation5 [shape = 's32[1]{0}', space=sflag, size = 0x4, scoped, tag = 'scoped memory for tpu_custom_call.1']
    #allocation6 [shape = 'u8[8192]{0}', space=vmem, size = 0x2000, scoped, tag = 'input window, operand 1, single buffered']
    #allocation7 [shape = 's32[1]{0}', space=sflag, size = 0x4, scoped, tag = 'scoped memory for tpu_custom_call.1']
    #allocation8 [shape = 'u8[8192]{0}', space=vmem, size = 0x2000, scoped, tag = 'output window, operand 0, single buffered']
    %7 = vsyncpa [#allocation4], 0
    %8 = vsyncpa [#allocation7], 0
    %9 = vsyncpa [#allocation5], 0
    // Predicated region
    $region2: #{tpu_custom_call.1} parent=1 // pred_check
      _
    $region3: #{tpu_custom_call.1} parent=1 // pred_check_branch
      %11 = sbr.rel (0) target = $region5
    $region4: #{tpu_custom_call.1} parent=1 // pred_region
      %s13 = ssub.s32 64, 64
      %14 = vsyncadd [#allocation4], %s13
      %s16 = sshll.u32 [#allocation3], 4
      %s17 = int_to_ptr.vmem [resolvable:$true] %s16
      %19 = dma.hbm_to_vmem [thread:$0]  %s0, 64, %s17, [#allocation4]
    $region5: #{tpu_custom_call.1} parent=1 // pred_fallthru
      _
    // Predicated region
    $region6: #{tpu_custom_call.1} parent=1 // pred_check
      _
    $region7: #{tpu_custom_call.1} parent=1 // pred_check_branch
      %21 = sbr.rel (0) target = $region9
    $region8: #{tpu_custom_call.1} parent=1 // pred_region
      %s23 = ssub.s32 256, 256
      %24 = vsyncadd [#allocation7], %s23
      %s26 = sshll.u32 [#allocation6], 4
      %s27 = int_to_ptr.vmem [resolvable:$true] %s26
      %29 = dma.hbm_to_vmem [thread:$0]  %s1, 256, %s27, [#allocation7]
    $region9: #{tpu_custom_call.1} parent=1 // pred_fallthru
      _
    // Predicated region
    $region10: #{tpu_custom_call.1} parent=1 // pred_check
      _
    $region11: #{tpu_custom_call.1} parent=1 // pred_check_branch
      %31 = sbr.rel (0) target = $region13
    $region12: #{tpu_custom_call.1} parent=1 // pred_region
      %32 = dma.done [#allocation4], 64
    $region13: #{tpu_custom_call.1} parent=1 // pred_fallthru
      _
    // Predicated region
    $region14: #{tpu_custom_call.1} parent=1 // pred_check
      _
    $region15: #{tpu_custom_call.1} parent=1 // pred_check_branch
      %34 = sbr.rel (0) target = $region17
    $region16: #{tpu_custom_call.1} parent=1 // pred_region
      %35 = dma.done [#allocation7], 256
    $region17: #{tpu_custom_call.1} parent=1 // pred_fallthru
      _
    %v36 = vld [vmem:[#allocation6] sm:$0x77]
    %v37 = vld [vmem:[#allocation6 + $0x8] sm:$0x77]
    %v38 = vlaneseq
    %v39 = vand.u32 %v38, 127
    %v40 = vadd.s32 %v39, 128
    %v41 = vadd.s32 %v39, 256
    %v42 = vadd.s32 %v39, 384
    %v43 = vand.u32 %v39, 15
    %v44 = vand.u32 %v40, 15
    %v45 = vand.u32 %v41, 15
    %v46 = vand.u32 %v42, 15
    %v47 = vshra.s32 %v39, 4
    %v48 = vshra.s32 %v40, 4
    %v49 = vshra.s32 %v41, 4
    %v50 = vshra.s32 %v42, 4
    %v51 = vand.u32 %v47, 15
    %v52 = vand.u32 %v48, 15
    %v53 = vand.u32 %v49, 15
    %v54 = vand.u32 %v50, 15
    %vm55 = vcmp.ge.s32.totalorder %v51, 1
    %vm56 = vcmp.ge.s32.totalorder %v52, 1
    %vm57 = vcmp.ge.s32.totalorder %v53, 1
    %vm58 = vcmp.ge.s32.totalorder %v54, 1
    %vm59 = vcmp.le.s32.totalorder %v51, 14
    %vm60 = vcmp.le.s32.totalorder %v52, 14
    %vm61 = vcmp.le.s32.totalorder %v53, 14
    %vm62 = vcmp.le.s32.totalorder %v54, 14
    %vm63 = vcmp.ge.s32.totalorder %v43, 1
    %vm64 = vcmp.ge.s32.totalorder %v44, 1
    %vm65 = vcmp.ge.s32.totalorder %v45, 1
    %vm66 = vcmp.ge.s32.totalorder %v46, 1
    %vm67 = vcmp.le.s32.totalorder %v43, 14
    %vm68 = vcmp.le.s32.totalorder %v44, 14
    %vm69 = vcmp.le.s32.totalorder %v45, 14
    %vm70 = vcmp.le.s32.totalorder %v46, 14
    %71 = vst [vmem:[#allocation2] sm:$0xff] 0.0
    %72 = vst [vmem:[#allocation2 + $0x8] sm:$0xff] 0.0
    %73 = vst [vmem:[#allocation2 + $0x10] sm:$0xff] 0.0
    %74 = vst [vmem:[#allocation2 + $0x18] sm:$0xff] 0.0
    %75 = vst [vmem:[#allocation2 + $0x20] sm:$0xff] 0.0
    %76 = vst [vmem:[#allocation2 + $0x28] sm:$0xff] 0.0
    %77 = vst [vmem:[#allocation2 + $0x30] sm:$0xff] 0.0
    %78 = vst [vmem:[#allocation2 + $0x38] sm:$0xff] 0.0
    %79 = vst [vmem:[#allocation2 + $0x40] sm:$0xff] 0.0
    %80 = vst [vmem:[#allocation2 + $0x48] sm:$0xff] 0.0
    %81 = vst [vmem:[#allocation2 + $0x50] sm:$0xff] 0.0
    %82 = vst [vmem:[#allocation2 + $0x58] sm:$0xff] 0.0
    %83 = vst [vmem:[#allocation2 + $0x60] sm:$0xff] 0.0
    %84 = vst [vmem:[#allocation2 + $0x68] sm:$0xff] 0.0
    %85 = vst [vmem:[#allocation2 + $0x70] sm:$0xff] 0.0
    %86 = vst [vmem:[#allocation2 + $0x78] sm:$0xff] 0.0
    %87 = vst [vmem:[#allocation2 + $0x80] sm:$0xff] 0.0
    %88 = vst [vmem:[#allocation2 + $0x88] sm:$0xff] 0.0
    %89 = vst [vmem:[#allocation2 + $0x90] sm:$0xff] 0.0
    %90 = vst [vmem:[#allocation2 + $0x98] sm:$0xff] 0.0
    %91 = vst [vmem:[#allocation2 + $0xa0] sm:$0xff] 0.0
    %92 = vst [vmem:[#allocation2 + $0xa8] sm:$0xff] 0.0
    %93 = vst [vmem:[#allocation2 + $0xb0] sm:$0xff] 0.0
    %94 = vst [vmem:[#allocation2 + $0xb8] sm:$0xff] 0.0
    %95 = vst [vmem:[#allocation2 + $0xc0] sm:$0xff] 0.0
    %96 = vst [vmem:[#allocation2 + $0xc8] sm:$0xff] 0.0
    %97 = vst [vmem:[#allocation2 + $0xd0] sm:$0xff] 0.0
    %98 = vst [vmem:[#allocation2 + $0xd8] sm:$0xff] 0.0
    %99 = vst [vmem:[#allocation2 + $0xe0] sm:$0xff] 0.0
    %100 = vst [vmem:[#allocation2 + $0xe8] sm:$0xff] 0.0
    %101 = vst [vmem:[#allocation2 + $0xf0] sm:$0xff] 0.0
    %102 = vst [vmem:[#allocation2 + $0xf8] sm:$0xff] 0.0
    %103 = vst [vmem:[#allocation2 + $0x100] sm:$0xff] 0.0
    %104 = vst [vmem:[#allocation2 + $0x108] sm:$0xff] 0.0
    %105 = vst [vmem:[#allocation2 + $0x110] sm:$0xff] 0.0
    %106 = vst [vmem:[#allocation2 + $0x118] sm:$0xff] 0.0
    %107 = vst [vmem:[#allocation2 + $0x120] sm:$0xff] 0.0
    %108 = vst [vmem:[#allocation2 + $0x128] sm:$0xff] 0.0
    %109 = vst [vmem:[#allocation2 + $0x130] sm:$0xff] 0.0
    %110 = vst [vmem:[#allocation2 + $0x138] sm:$0xff] 0.0
    %v111 = vlaneseq
    %vm112 = vcmp.ge.s32.totalorder %v111, 0
    %vm113 = vcmp.lt.s32.totalorder %v111, 512
    %vm114 = vmand %vm112, %vm113
    %s115 = scalar_lea.vmem [#allocation2], 288
    %116 = vst.msk [vmem:[%s115] ss:$8 sm:$0xf] %vm114, 1.0
    %117 = vst.msk [vmem:[%s115] ss:$8 sm:$0x0] %vm114, 1.0
    %v120 = vcombine.high %v36, %v36
    %v121 = vcombine.high %v37, %v37
    %124 = vrot.lane.b32.xlu0 %v36, 17
    %v125 = vpop.permute.xlu0 %124
    %126 = vrot.lane.b32.xlu0 %v120, 17
    %v127 = vpop.permute.xlu0 %126
    %128 = vrot.lane.b32.xlu0 %v37, 17
    %v129 = vpop.permute.xlu0 %128
    %130 = vrot.lane.b32.xlu0 %v121, 17
    %v131 = vpop.permute.xlu0 %130
    %vm132 = vcmp.lt.s32.totalorder %v39, 17
    %v133 = vsel %vm132, %v129, %v131
    %v134 = vsel %vm132, %v127, %v129
    %v135 = vsel %vm132, %v125, %v127
    %v136 = vsel %vm132, %v131, %v125
    %vm137 = vmand %vm55, %vm63
    %vm138 = vmand %vm56, %vm64
    %vm139 = vmand %vm57, %vm65
    %vm140 = vmand %vm58, %vm66
    %v141 = vsel %vm137, 1, 0
    %v142 = vsel %vm138, 1, 0
    %v143 = vsel %vm139, 1, 0
    %v144 = vsel %vm140, 1, 0
    %vm145 = vcmp.eq.s32.totalorder %v141, 1
    %vm146 = vcmp.eq.s32.totalorder %v142, 1
    %vm147 = vcmp.eq.s32.totalorder %v143, 1
    %vm148 = vcmp.eq.s32.totalorder %v144, 1
    %v149 = vsel %vm145, %v136, 0.0
    %v150 = vsel %vm146, %v135, 0.0
    %v151 = vsel %vm147, %v134, 0.0
    %v152 = vsel %vm148, %v133, 0.0
    %153 = vst [vmem:[#allocation2] sm:$0x7] %v149
    %154 = vst [vmem:[#allocation2 + $0x8] sm:$0x7] %v150
    %155 = vst [vmem:[#allocation2 + $0x10] sm:$0x7] %v151
    %156 = vst [vmem:[#allocation2 + $0x18] sm:$0x7] %v152
    %157 = vrot.lane.b32.xlu0 %v36, 16
    %v158 = vpop.permute.xlu0 %157
    %159 = vrot.lane.b32.xlu0 %v120, 16
    %v160 = vpop.permute.xlu0 %159
    %161 = vrot.lane.b32.xlu0 %v37, 16
    %v162 = vpop.permute.xlu0 %161
    %163 = vrot.lane.b32.xlu0 %v121, 16
    %v164 = vpop.permute.xlu0 %163
    %vm165 = vcmp.lt.s32.totalorder %v39, 16
    %v166 = vsel %vm165, %v162, %v164
    %v167 = vsel %vm165, %v160, %v162
    %v168 = vsel %vm165, %v158, %v160
    %v169 = vsel %vm165, %v164, %v158
    %v170 = vsel %vm55, 1, 0
    %v171 = vsel %vm56, 1, 0
    %v172 = vsel %vm57, 1, 0
    %v173 = vsel %vm58, 1, 0
    %vm174 = vcmp.eq.s32.totalorder %v170, 1
    %vm175 = vcmp.eq.s32.totalorder %v171, 1
    %vm176 = vcmp.eq.s32.totalorder %v172, 1
    %vm177 = vcmp.eq.s32.totalorder %v173, 1
    %v178 = vsel %vm174, %v169, 0.0
    %v179 = vsel %vm175, %v168, 0.0
    %v180 = vsel %vm176, %v167, 0.0
    %v181 = vsel %vm177, %v166, 0.0
    %182 = vst [vmem:[#allocation2 + $0x20] sm:$0x7] %v178
    %183 = vst [vmem:[#allocation2 + $0x28] sm:$0x7] %v179
    %184 = vst [vmem:[#allocation2 + $0x30] sm:$0x7] %v180
    %185 = vst [vmem:[#allocation2 + $0x38] sm:$0x7] %v181
    %186 = vrot.lane.b32.xlu0 %v36, 15
    %v187 = vpop.permute.xlu0 %186
    %188 = vrot.lane.b32.xlu0 %v120, 15
    %v189 = vpop.permute.xlu0 %188
    %190 = vrot.lane.b32.xlu0 %v37, 15
    %v191 = vpop.permute.xlu0 %190
    %192 = vrot.lane.b32.xlu0 %v121, 15
    %v193 = vpop.permute.xlu0 %192
    %vm194 = vcmp.lt.s32.totalorder %v39, 15
    %v195 = vsel %vm194, %v191, %v193
    %v196 = vsel %vm194, %v189, %v191
    %v197 = vsel %vm194, %v187, %v189
    %v198 = vsel %vm194, %v193, %v187
    %vm199 = vmand %vm55, %vm67
    %vm200 = vmand %vm56, %vm68
    %vm201 = vmand %vm57, %vm69
    %vm202 = vmand %vm58, %vm70
    %v203 = vsel %vm199, 1, 0
    %v204 = vsel %vm200, 1, 0
    %v205 = vsel %vm201, 1, 0
    %v206 = vsel %vm202, 1, 0
    %vm207 = vcmp.eq.s32.totalorder %v203, 1
    %vm208 = vcmp.eq.s32.totalorder %v204, 1
    %vm209 = vcmp.eq.s32.totalorder %v205, 1
    %vm210 = vcmp.eq.s32.totalorder %v206, 1
    %v211 = vsel %vm207, %v198, 0.0
    %v212 = vsel %vm208, %v197, 0.0
    %v213 = vsel %vm209, %v196, 0.0
    %v214 = vsel %vm210, %v195, 0.0
    %215 = vst [vmem:[#allocation2 + $0x40] sm:$0x7] %v211
    %216 = vst [vmem:[#allocation2 + $0x48] sm:$0x7] %v212
    %217 = vst [vmem:[#allocation2 + $0x50] sm:$0x7] %v213
    %218 = vst [vmem:[#allocation2 + $0x58] sm:$0x7] %v214
    %219 = vrot.lane.b32.xlu0 %v36, 1
    %v220 = vpop.permute.xlu0 %219
    %221 = vrot.lane.b32.xlu0 %v120, 1
    %v222 = vpop.permute.xlu0 %221
    %223 = vrot.lane.b32.xlu0 %v37, 1
    %v224 = vpop.permute.xlu0 %223
    %225 = vrot.lane.b32.xlu0 %v121, 1
    %v226 = vpop.permute.xlu0 %225
    %vm227 = vcmp.lt.s32.totalorder %v39, 1
    %v228 = vsel %vm227, %v224, %v226
    %v229 = vsel %vm227, %v222, %v224
    %v230 = vsel %vm227, %v220, %v222
    %v231 = vsel %vm227, %v226, %v220
    %v232 = vsel %vm63, 1, 0
    %v233 = vsel %vm64, 1, 0
    %v234 = vsel %vm65, 1, 0
    %v235 = vsel %vm66, 1, 0
    %vm236 = vcmp.eq.s32.totalorder %v232, 1
    %vm237 = vcmp.eq.s32.totalorder %v233, 1
    %vm238 = vcmp.eq.s32.totalorder %v234, 1
    %vm239 = vcmp.eq.s32.totalorder %v235, 1
    %v240 = vsel %vm236, %v231, 0.0
    %v241 = vsel %vm237, %v230, 0.0
    %v242 = vsel %vm238, %v229, 0.0
    %v243 = vsel %vm239, %v228, 0.0
    %244 = vst [vmem:[#allocation2 + $0x60] sm:$0x7] %v240
    %245 = vst [vmem:[#allocation2 + $0x68] sm:$0x7] %v241
    %246 = vst [vmem:[#allocation2 + $0x70] sm:$0x7] %v242
    %247 = vst [vmem:[#allocation2 + $0x78] sm:$0x7] %v243
    %248 = vst [vmem:[#allocation2 + $0x80] sm:$0x7] %v36
    %249 = vst [vmem:[#allocation2 + $0x88] sm:$0x7] %v120
    %250 = vst [vmem:[#allocation2 + $0x90] sm:$0x7] %v37
    %251 = vst [vmem:[#allocation2 + $0x98] sm:$0x7] %v121
    %252 = vrot.lane.b32.xlu0 %v36, 127
    %v253 = vpop.permute.xlu0 %252
    %254 = vrot.lane.b32.xlu0 %v120, 127
    %v255 = vpop.permute.xlu0 %254
    %256 = vrot.lane.b32.xlu0 %v37, 127
    %v257 = vpop.permute.xlu0 %256
    %258 = vrot.lane.b32.xlu0 %v121, 127
    %v259 = vpop.permute.xlu0 %258
    %vm260 = vcmp.lt.s32.totalorder %v39, 127
    %v261 = vsel %vm260, %v257, %v259
    %v262 = vsel %vm260, %v255, %v257
    %v263 = vsel %vm260, %v253, %v255
    %v264 = vsel %vm260, %v259, %v253
    %v265 = vsel %vm67, 1, 0
    %v266 = vsel %vm68, 1, 0
    %v267 = vsel %vm69, 1, 0
    %v268 = vsel %vm70, 1, 0
    %vm269 = vcmp.eq.s32.totalorder %v265, 1
    %vm270 = vcmp.eq.s32.totalorder %v266, 1
    %vm271 = vcmp.eq.s32.totalorder %v267, 1
    %vm272 = vcmp.eq.s32.totalorder %v268, 1
    %v273 = vsel %vm269, %v263, 0.0
    %v274 = vsel %vm270, %v262, 0.0
    %v275 = vsel %vm271, %v261, 0.0
    %v276 = vsel %vm272, %v264, 0.0
    %277 = vst [vmem:[#allocation2 + $0xa0] sm:$0x7] %v273
    %278 = vst [vmem:[#allocation2 + $0xa8] sm:$0x7] %v274
    %279 = vst [vmem:[#allocation2 + $0xb0] sm:$0x7] %v275
    %280 = vst [vmem:[#allocation2 + $0xb8] sm:$0x7] %v276
    %281 = vrot.lane.b32.xlu0 %v36, 113
    %v282 = vpop.permute.xlu0 %281
    %283 = vrot.lane.b32.xlu0 %v120, 113
    %v284 = vpop.permute.xlu0 %283
    %285 = vrot.lane.b32.xlu0 %v37, 113
    %v286 = vpop.permute.xlu0 %285
    %287 = vrot.lane.b32.xlu0 %v121, 113
    %v288 = vpop.permute.xlu0 %287
    %vm289 = vcmp.lt.s32.totalorder %v39, 113
    %v290 = vsel %vm289, %v286, %v288
    %v291 = vsel %vm289, %v284, %v286
    %v292 = vsel %vm289, %v282, %v284
    %v293 = vsel %vm289, %v288, %v282
    %vm294 = vmand %vm59, %vm63
    %vm295 = vmand %vm60, %vm64
    %vm296 = vmand %vm61, %vm65
    %vm297 = vmand %vm62, %vm66
    %v298 = vsel %vm294, 1, 0
    %v299 = vsel %vm295, 1, 0
    %v300 = vsel %vm296, 1, 0
    %v301 = vsel %vm297, 1, 0
    %vm302 = vcmp.eq.s32.totalorder %v298, 1
    %vm303 = vcmp.eq.s32.totalorder %v299, 1
    %vm304 = vcmp.eq.s32.totalorder %v300, 1
    %vm305 = vcmp.eq.s32.totalorder %v301, 1
    %v306 = vsel %vm302, %v292, 0.0
    %v307 = vsel %vm303, %v291, 0.0
    %v308 = vsel %vm304, %v290, 0.0
    %v309 = vsel %vm305, %v293, 0.0
    %310 = vst [vmem:[#allocation2 + $0xc0] sm:$0x7] %v306
    %311 = vst [vmem:[#allocation2 + $0xc8] sm:$0x7] %v307
    %312 = vst [vmem:[#allocation2 + $0xd0] sm:$0x7] %v308
    %313 = vst [vmem:[#allocation2 + $0xd8] sm:$0x7] %v309
    %314 = vrot.lane.b32.xlu0 %v36, 112
    %v315 = vpop.permute.xlu0 %314
    %316 = vrot.lane.b32.xlu0 %v120, 112
    %v317 = vpop.permute.xlu0 %316
    %318 = vrot.lane.b32.xlu0 %v37, 112
    %v319 = vpop.permute.xlu0 %318
    %320 = vrot.lane.b32.xlu0 %v121, 112
    %v321 = vpop.permute.xlu0 %320
    %vm322 = vcmp.lt.s32.totalorder %v39, 112
    %v323 = vsel %vm322, %v319, %v321
    %v324 = vsel %vm322, %v317, %v319
    %v325 = vsel %vm322, %v315, %v317
    %v326 = vsel %vm322, %v321, %v315
    %v327 = vsel %vm59, 1, 0
    %v328 = vsel %vm60, 1, 0
    %v329 = vsel %vm61, 1, 0
    %v330 = vsel %vm62, 1, 0
    %vm331 = vcmp.eq.s32.totalorder %v327, 1
    %vm332 = vcmp.eq.s32.totalorder %v328, 1
    %vm333 = vcmp.eq.s32.totalorder %v329, 1
    %vm334 = vcmp.eq.s32.totalorder %v330, 1
    %v335 = vsel %vm331, %v325, 0.0
    %v336 = vsel %vm332, %v324, 0.0
    %v337 = vsel %vm333, %v323, 0.0
    %v338 = vsel %vm334, %v326, 0.0
    %339 = vst [vmem:[#allocation2 + $0xe0] sm:$0x7] %v335
    %340 = vst [vmem:[#allocation2 + $0xe8] sm:$0x7] %v336
    %341 = vst [vmem:[#allocation2 + $0xf0] sm:$0x7] %v337
    %342 = vst [vmem:[#allocation2 + $0xf8] sm:$0x7] %v338
    %343 = vrot.lane.b32.xlu0 %v36, 111
    %v344 = vpop.permute.xlu0 %343
    %345 = vrot.lane.b32.xlu0 %v120, 111
    %v346 = vpop.permute.xlu0 %345
    %347 = vrot.lane.b32.xlu0 %v37, 111
    %v348 = vpop.permute.xlu0 %347
    %349 = vrot.lane.b32.xlu0 %v121, 111
    %v350 = vpop.permute.xlu0 %349
    %vm351 = vcmp.lt.s32.totalorder %v39, 111
    %v352 = vsel %vm351, %v348, %v350
    %v353 = vsel %vm351, %v346, %v348
    %v354 = vsel %vm351, %v344, %v346
    %v355 = vsel %vm351, %v350, %v344
    %vm356 = vmand %vm59, %vm67
    %vm357 = vmand %vm60, %vm68
    %vm358 = vmand %vm61, %vm69
    %vm359 = vmand %vm62, %vm70
    %v360 = vsel %vm356, 1, 0
    %v361 = vsel %vm357, 1, 0
    %v362 = vsel %vm358, 1, 0
    %v363 = vsel %vm359, 1, 0
    %vm364 = vcmp.eq.s32.totalorder %v360, 1
    %vm365 = vcmp.eq.s32.totalorder %v361, 1
    %vm366 = vcmp.eq.s32.totalorder %v362, 1
    %vm367 = vcmp.eq.s32.totalorder %v363, 1
    %v368 = vsel %vm364, %v354, 0.0
    %v369 = vsel %vm365, %v353, 0.0
    %v370 = vsel %vm366, %v352, 0.0
    %v371 = vsel %vm367, %v355, 0.0
    %372 = vst [vmem:[#allocation2 + $0x100] sm:$0x7] %v368
    %373 = vst [vmem:[#allocation2 + $0x108] sm:$0x7] %v369
    %374 = vst [vmem:[#allocation2 + $0x110] sm:$0x7] %v370
    %375 = vst [vmem:[#allocation2 + $0x118] sm:$0x7] %v371
    %v376 = vld [vmem:[#allocation3] sm:$0x7]
    %v377 = vld [vmem:[#allocation2] sm:$0xff]
    %v378 = vld [vmem:[#allocation2 + $0x8] sm:$0xff]
    %v379 = vld [vmem:[#allocation2 + $0x10] sm:$0xff]
    %v380 = vld [vmem:[#allocation2 + $0x18] sm:$0xff]
    %v381 = vld [vmem:[#allocation2 + $0x20] sm:$0xff]
    %v382 = vld [vmem:[#allocation2 + $0x28] sm:$0xff]
    %v383 = vld [vmem:[#allocation2 + $0x30] sm:$0xff]
    %v384 = vld [vmem:[#allocation2 + $0x38] sm:$0xff]
    %v385 = vld [vmem:[#allocation2 + $0x40] sm:$0xff]
    %v386 = vld [vmem:[#allocation2 + $0x48] sm:$0xff]
    %v387 = vld [vmem:[#allocation2 + $0x50] sm:$0xff]
    %v388 = vld [vmem:[#allocation2 + $0x58] sm:$0xff]
    %v389 = vld [vmem:[#allocation2 + $0x60] sm:$0xff]
    %v390 = vld [vmem:[#allocation2 + $0x68] sm:$0xff]
    %v391 = vld [vmem:[#allocation2 + $0x70] sm:$0xff]
    %v392 = vld [vmem:[#allocation2 + $0x78] sm:$0xff]
    %v393 = vld [vmem:[#allocation2 + $0x80] sm:$0xff]
    %v394 = vld [vmem:[#allocation2 + $0x88] sm:$0xff]
    %v395 = vld [vmem:[#allocation2 + $0x90] sm:$0xff]
    %v396 = vld [vmem:[#allocation2 + $0x98] sm:$0xff]
    %v397 = vld [vmem:[#allocation2 + $0xa0] sm:$0xff]
    %v398 = vld [vmem:[#allocation2 + $0xa8] sm:$0xff]
    %v399 = vld [vmem:[#allocation2 + $0xb0] sm:$0xff]
    %v400 = vld [vmem:[#allocation2 + $0xb8] sm:$0xff]
    %v401 = vld [vmem:[#allocation2 + $0xc0] sm:$0xff]
    %v402 = vld [vmem:[#allocation2 + $0xc8] sm:$0xff]
    %v403 = vld [vmem:[#allocation2 + $0xd0] sm:$0xff]
    %v404 = vld [vmem:[#allocation2 + $0xd8] sm:$0xff]
    %v405 = vld [vmem:[#allocation2 + $0xe0] sm:$0xff]
    %v406 = vld [vmem:[#allocation2 + $0xe8] sm:$0xff]
    %v407 = vld [vmem:[#allocation2 + $0xf0] sm:$0xff]
    %v408 = vld [vmem:[#allocation2 + $0xf8] sm:$0xff]
    %v409 = vld [vmem:[#allocation2 + $0x100] sm:$0xff]
    %v410 = vld [vmem:[#allocation2 + $0x108] sm:$0xff]
    %v411 = vld [vmem:[#allocation2 + $0x110] sm:$0xff]
    %v412 = vld [vmem:[#allocation2 + $0x118] sm:$0xff]
    %v413 = vld [vmem:[#allocation2 + $0x120] sm:$0xff]
    %v414 = vld [vmem:[#allocation2 + $0x128] sm:$0xff]
    %v415 = vld [vmem:[#allocation2 + $0x130] sm:$0xff]
    %v416 = vld [vmem:[#allocation2 + $0x138] sm:$0xff]
    %vm417 = vcmask 654336
    %v419 = vsel %vm417, %v376, 0
    %421 = vmatprep.subr.mxu0 0.0
    %422 = vmatpush1.msra.mxu0 0.0
    %423 = vmatprep.subr.mxu0 0.0
    %424 = vmatpush1.msra.mxu0 0.0
    %425 = vmatprep.subr.mxu0 0.0
    %426 = vmatpush1.msra.mxu0 0.0
    %427 = vmatprep.subr.mxu0 0.0
    %428 = vmatpush1.msra.mxu0 0.0
    %429 = vmatprep.subr.mxu0 0.0
    %430 = vmatpush1.msra.mxu0 0.0
    %431 = vmatprep.subr.mxu0 0.0
    %432 = vmatpush1.msra.mxu0 0.0
    %433 = vmatprep.subr.mxu0 %v414
    %434 = vmatpush1.msra.mxu0 %v413
    %435 = vmatprep.subr.mxu0 %v410
    %436 = vmatpush1.msra.mxu0 %v409
    %437 = vmatprep.subr.mxu0 %v406
    %438 = vmatpush1.msra.mxu0 %v405
    %439 = vmatprep.subr.mxu0 %v402
    %440 = vmatpush1.msra.mxu0 %v401
    %441 = vmatprep.subr.mxu0 %v398
    %442 = vmatpush1.msra.mxu0 %v397
    %443 = vmatprep.subr.mxu0 %v394
    %444 = vmatpush1.msra.mxu0 %v393
    %445 = vmatprep.subr.mxu0 %v390
    %446 = vmatpush1.msra.mxu0 %v389
    %447 = vmatprep.subr.mxu0 %v386
    %448 = vmatpush1.msra.mxu0 %v385
    %449 = vmatprep.subr.mxu0 %v382
    %450 = vmatpush1.msra.mxu0 %v381
    %451 = vmatprep.subr.mxu0 %v378
    %452 = vmatpush1.msra.mxu0 %v377
    %453 = vmatprep.subr.mxu0 0.0
    %454 = vmatpush2.msra.mxu0 0.0
    %455 = vmatprep.subr.mxu0 0.0
    %456 = vmatpush2.msra.mxu0 0.0
    %457 = vmatprep.subr.mxu0 0.0
    %458 = vmatpush2.msra.mxu0 0.0
    %459 = vmatprep.subr.mxu0 0.0
    %460 = vmatpush2.msra.mxu0 0.0
    %461 = vmatprep.subr.mxu0 0.0
    %462 = vmatpush2.msra.mxu0 0.0
    %463 = vmatprep.subr.mxu0 0.0
    %464 = vmatpush2.msra.mxu0 0.0
    %465 = vmatprep.subr.mxu0 0.0
    %466 = vmatpush2.msra.mxu0 0.0
    %467 = vmatprep.subr.mxu0 0.0
    %468 = vmatpush2.msra.mxu0 0.0
    %469 = vmatprep.subr.mxu0 0.0
    %470 = vmatpush2.msra.mxu0 0.0
    %471 = vmatprep.subr.mxu0 0.0
    %472 = vmatpush2.msra.mxu0 0.0
    %473 = vmatprep.subr.mxu0 0.0
    %474 = vmatpush2.msra.mxu0 0.0
    %475 = vmatprep.subr.mxu0 0.0
    %476 = vmatpush2.msra.mxu0 0.0
    %477 = vmatprep.subr.mxu0 0.0
    %478 = vmatpush2.msra.mxu0 0.0
    %479 = vmatprep.subr.mxu0 0.0
    %480 = vmatpush2.msra.mxu0 0.0
    %481 = vmatprep.subr.mxu0 0.0
    %482 = vmatpush2.msra.mxu0 0.0
    %483 = vmatprep.subr.mxu0 0.0
    %484 = vmatpush2.msra.mxu0 0.0
    %485 = vmatprep.mubr.f32.mxu0 0.0
    %486 = vmatmul.mubr.f32.gmra.mxu0 %v419
    %v487 = vpop.f32.mrf.mxu0
    %v488 = vadd.f32 0.0, %v487
    %v489 = vpop.f32.mrf.mxu0
    %v490 = vadd.f32 0.0, %v489
    %491 = vdwg.mxu0
    %492 = vmatprep.subr.mxu0 0.0
    %493 = vmatpush1.msra.mxu0 0.0
    %494 = vmatprep.subr.mxu0 0.0
    %495 = vmatpush1.msra.mxu0 0.0
    %496 = vmatprep.subr.mxu0 0.0
    %497 = vmatpush1.msra.mxu0 0.0
    %498 = vmatprep.subr.mxu0 0.0
    %499 = vmatpush1.msra.mxu0 0.0
    %500 = vmatprep.subr.mxu0 0.0
    %501 = vmatpush1.msra.mxu0 0.0
    %502 = vmatprep.subr.mxu0 0.0
    %503 = vmatpush1.msra.mxu0 0.0
    %504 = vmatprep.subr.mxu0 %v416
    %505 = vmatpush1.msra.mxu0 %v415
    %506 = vmatprep.subr.mxu0 %v412
    %507 = vmatpush1.msra.mxu0 %v411
    %508 = vmatprep.subr.mxu0 %v408
    %509 = vmatpush1.msra.mxu0 %v407
    %510 = vmatprep.subr.mxu0 %v404
    %511 = vmatpush1.msra.mxu0 %v403
    %512 = vmatprep.subr.mxu0 %v400
    %513 = vmatpush1.msra.mxu0 %v399
    %514 = vmatprep.subr.mxu0 %v396
    %515 = vmatpush1.msra.mxu0 %v395
    %516 = vmatprep.subr.mxu0 %v392
    %517 = vmatpush1.msra.mxu0 %v391
    %518 = vmatprep.subr.mxu0 %v388
    %519 = vmatpush1.msra.mxu0 %v387
    %520 = vmatprep.subr.mxu0 %v384
    %521 = vmatpush1.msra.mxu0 %v383
    %522 = vmatprep.subr.mxu0 %v380
    %523 = vmatpush1.msra.mxu0 %v379
    %524 = vmatprep.subr.mxu0 0.0
    %525 = vmatpush2.msra.mxu0 0.0
    %526 = vmatprep.subr.mxu0 0.0
    %527 = vmatpush2.msra.mxu0 0.0
    %528 = vmatprep.subr.mxu0 0.0
    %529 = vmatpush2.msra.mxu0 0.0
    %530 = vmatprep.subr.mxu0 0.0
    %531 = vmatpush2.msra.mxu0 0.0
    %532 = vmatprep.subr.mxu0 0.0
    %533 = vmatpush2.msra.mxu0 0.0
    %534 = vmatprep.subr.mxu0 0.0
    %535 = vmatpush2.msra.mxu0 0.0
    %536 = vmatprep.subr.mxu0 0.0
    %537 = vmatpush2.msra.mxu0 0.0
    %538 = vmatprep.subr.mxu0 0.0
    %539 = vmatpush2.msra.mxu0 0.0
    %540 = vmatprep.subr.mxu0 0.0
    %541 = vmatpush2.msra.mxu0 0.0
    %542 = vmatprep.subr.mxu0 0.0
    %543 = vmatpush2.msra.mxu0 0.0
    %544 = vmatprep.subr.mxu0 0.0
    %545 = vmatpush2.msra.mxu0 0.0
    %546 = vmatprep.subr.mxu0 0.0
    %547 = vmatpush2.msra.mxu0 0.0
    %548 = vmatprep.subr.mxu0 0.0
    %549 = vmatpush2.msra.mxu0 0.0
    %550 = vmatprep.subr.mxu0 0.0
    %551 = vmatpush2.msra.mxu0 0.0
    %552 = vmatprep.subr.mxu0 0.0
    %553 = vmatpush2.msra.mxu0 0.0
    %554 = vmatprep.subr.mxu0 0.0
    %555 = vmatpush2.msra.mxu0 0.0
    %556 = vmatprep.mubr.f32.mxu0 0.0
    %557 = vmatmul.mubr.f32.gmra.mxu0 %v419
    %v558 = vpop.f32.mrf.mxu0
    %v559 = vadd.f32 0.0, %v558
    %v560 = vpop.f32.mrf.mxu0
    %v561 = vadd.f32 0.0, %v560
    %562 = vdwg.mxu0
    %v567 = vcombine.low %v488, %v490
    %v568 = vcombine.low %v559, %v561
    %571 = vst [vmem:[#allocation8] sm:$0x77] %v567
    %572 = vst [vmem:[#allocation8 + $0x8] sm:$0x77] %v568
    // Predicated region
    $region18: #{tpu_custom_call.1} parent=1 // pred_check
      _
    $region19: #{tpu_custom_call.1} parent=1 // pred_check_branch
      %574 = sbr.rel (0) target = $region21
    $region20: #{tpu_custom_call.1} parent=1 // pred_region
      %s576 = ssub.s32 256, 256
      %577 = vsyncadd [#allocation5], %s576
      %s579 = sshll.u32 [#allocation8], 4
      %s580 = int_to_ptr.vmem [resolvable:$true] %s579
      %582 = dma.vmem_to_hbm [thread:$0]  %s580, 256, %s2, [#allocation5]
    $region21: #{tpu_custom_call.1} parent=1 // pred_fallthru
      _
    // Predicated region
    $region22: #{tpu_custom_call.1} parent=1 // pred_check
      _
    $region23: #{tpu_custom_call.1} parent=1 // pred_check_branch
      %584 = sbr.rel (0) target = $region25
    $region24: #{tpu_custom_call.1} parent=1 // pred_region
      %585 = dma.done [#allocation5], 256
    $region25: #{tpu_custom_call.1} parent=1 // pred_fallthru
      _
    %586 = vsyncpa [#allocation4], 1
    %587 = vsyncpa [#allocation7], 1
    %588 = vsyncpa [#allocation5], 1

</llo_original>
